<compile_context>
chip_gen: v7x
topology: tpu7x:2x2x1
jax: 0.10.0
libtpu: 0.0.40
codegen_flags: <defaults>
</compile_context>

<pallas_src>
import functools

import jax
import jax.numpy as jnp
from jax import lax
from jax.experimental import pallas as pl
from jax.experimental.pallas import tpu as pltpu


def _transe_kernel(h_ref, r_ref, t_ref, o_ref, *, margin, p_norm, norm_flag):
    h = h_ref[...].astype(jnp.float32)
    r = r_ref[...].astype(jnp.float32)
    t = t_ref[...].astype(jnp.float32)

    if norm_flag:
        # F.normalize(x, p=2, dim=-1) == x / max(||x||_2, 1e-12).
        # rsqrt runs on the EUP (its own VLIW slot) instead of a full-rate
        # VALU divide; clamping the *squared* norm at 1e-24 preserves the
        # eps-on-the-norm semantics.
        def l2_normalize(x):
            s = jnp.sum(x * x, axis=-1, keepdims=True)
            return x * lax.rsqrt(jnp.maximum(s, jnp.float32(1e-24)))

        h = l2_normalize(h)
        r = l2_normalize(r)
        t = l2_normalize(t)

    score = h + r - t  # (tile_b, D)

    if p_norm == 1:
        dist = jnp.sum(jnp.abs(score), axis=-1, keepdims=True)  # (tile_b, 1)
    elif p_norm == 2:
        dist = jnp.sqrt(jnp.sum(score * score, axis=-1, keepdims=True))
    else:
        dist = jnp.power(
            jnp.sum(jnp.power(jnp.abs(score), p_norm), axis=-1, keepdims=True),
            1.0 / p_norm,
        )

    o_ref[...] = (jnp.float32(margin) - dist).astype(o_ref.dtype)


_MAX_TILE_B = 8192
# Only split a single-tile batch into >=2 grid steps (for v7x's two
# TensorCores) when each half is at least this many rows.
_MIN_SPLIT_ROWS = 512


def _vmem_plan():
    """Returns (vmem_limit_bytes, working_budget_bytes) per TPU generation."""
    try:
        phys = int(pltpu.get_tpu_info().vmem_capacity_bytes)
    except Exception:  # interpret mode / older jax: assume the smallest (v7x)
        phys = 64 * 1024 * 1024
    if phys >= 100 * 1024 * 1024:
        # v5e / v6e: 128 MiB physical VMEM per TensorCore.
        return 64 * 1024 * 1024, 48 * 1024 * 1024
    # v7x: only 64 MiB physical per TC -> keep ample headroom for the
    # compiler's internal scratch and the pipeline machinery.
    return 36 * 1024 * 1024, 28 * 1024 * 1024


def _choose_tile_b(batch, dim, in_itemsize, budget_bytes):
    # Per-row VMEM bytes:
    #   3 inputs x 2 pipeline buffers at the input dtype
    # + ~4 live f32 (tile_b, D) intermediates (h, r, t, score) from the
    #   in-kernel upcast (matters for bf16 inputs)
    # + slack for the (tile_b, 1) output block.
    bytes_per_row = 6 * dim * in_itemsize + 4 * dim * 4 + 32
    rows = max(8, budget_bytes // bytes_per_row)
    cap = max(8, min(_MAX_TILE_B, (rows // 8) * 8))
    if batch <= cap:
        if batch >= 2 * _MIN_SPLIT_ROWS:
            # Force >=2 grid steps so the "parallel" batch axis can shard
            # across v7x's two TensorCores (harmless on single-TC chips).
            half = -(-batch // 2)
            return min(cap, max(8, -(-half // 8) * 8))
        return batch  # full-extent block: always a legal block shape
    return cap


def transe_forward(head, relation, tail, *, p_norm=1, norm_flag=True, margin=1,
                   tile_b=None):
    """Pallas implementation of TransE.forward.

    head, relation, tail: (B, D) arrays (f32 or bf16). Returns (B,) f32 scores.
    """
    assert head.shape == relation.shape == tail.shape
    B, D = head.shape
    itemsize = jnp.dtype(head.dtype).itemsize

    vmem_limit, vmem_budget = _vmem_plan()

    if tile_b is None:
        tile_b = _choose_tile_b(B, D, itemsize, vmem_budget)
    else:
        tile_b = int(tile_b)
        if tile_b >= B:
            tile_b = B                      # full extent: always legal
        else:
            tile_b = max(8, (tile_b // 8) * 8)  # sublane multiple

    n_tiles = pl.cdiv(B, tile_b)

    kernel = functools.partial(
        _transe_kernel, margin=float(margin), p_norm=p_norm, norm_flag=norm_flag
    )

    # Memory-bound roofline hint for XLA scheduling around the custom call.
    cost = pl.CostEstimate(
        flops=10 * B * D,
        transcendentals=(3 * B) if norm_flag else 0,
        bytes_accessed=3 * B * D * itemsize + B * 4,
    )

    out = pl.pallas_call(
        kernel,
        out_shape=jax.ShapeDtypeStruct((B, 1), jnp.float32),
        grid=(n_tiles,),
        in_specs=[
            pl.BlockSpec((tile_b, D), lambda i: (i, 0)),
            pl.BlockSpec((tile_b, D), lambda i: (i, 0)),
            pl.BlockSpec((tile_b, D), lambda i: (i, 0)),
        ],
        out_specs=pl.BlockSpec((tile_b, 1), lambda i: (i, 0)),
        compiler_params=pltpu.CompilerParams(
            # Batch tiles are independent: lets v7x shard the grid across its
            # two TensorCores; harmless on v5e/v6e.
            dimension_semantics=("parallel",),
            vmem_limit_bytes=vmem_limit,
        ),
        cost_estimate=cost,
    )(head, relation, tail)
    return out[:, 0]


def transe_reference(head, relation, tail, *, p_norm=1, norm_flag=True, margin=1):
    head = head.astype(jnp.float32)
    relation = relation.astype(jnp.float32)
    tail = tail.astype(jnp.float32)
    if norm_flag:
        def l2n(x):
            n = jnp.sqrt(jnp.sum(x * x, axis=-1, keepdims=True))
            return x / jnp.maximum(n, 1e-12)
        head, relation, tail = l2n(head), l2n(relation), l2n(tail)
    score = head + relation - tail
    if p_norm == 1:
        dist = jnp.sum(jnp.abs(score), axis=-1)
    else:
        dist = jnp.sqrt(jnp.sum(score * score, axis=-1))
    return margin - dist


if __name__ == "__main__":
    key = jax.random.PRNGKey(0)

    # --- Case 1: small batch of triples, single full-extent tile ---
    B, D = 8, 32
    k_h, k_r, k_t, key = jax.random.split(key, 4)
    head = jax.random.normal(k_h, (B, D), dtype=jnp.float32)
    relation = jax.random.normal(k_r, (B, D), dtype=jnp.float32)
    tail = jax.random.normal(k_t, (B, D), dtype=jnp.float32)

    out = transe_forward(head, relation, tail, p_norm=1, norm_flag=True, margin=1)
    out = jax.block_until_ready(out)
    ref = transe_reference(head, relation, tail, p_norm=1, norm_flag=True, margin=1)
    assert out.shape == (B,)
    assert jnp.allclose(out, ref, atol=1e-5, rtol=1e-5), (out, ref)

    # --- Case 2: B not a multiple of the tile -> ragged last block, no host pad ---
    B2, D2 = 40, 32
    k_h2, k_r2, k_t2, key = jax.random.split(key, 4)
    head2 = jax.random.normal(k_h2, (B2, D2), dtype=jnp.float32)
    relation2 = jax.random.normal(k_r2, (B2, D2), dtype=jnp.float32)
    tail2 = jax.random.normal(k_t2, (B2, D2), dtype=jnp.float32)

    out2 = transe_forward(head2, relation2, tail2, p_norm=1, norm_flag=True,
                          margin=1, tile_b=16)  # grid=(3,), last block masked
    out2 = jax.block_until_ready(out2)
    ref2 = transe_reference(head2, relation2, tail2, p_norm=1, norm_flag=True,
                            margin=1)
    assert out2.shape == (B2,)
    assert jnp.allclose(out2, ref2, atol=1e-5, rtol=1e-5), (out2, ref2)

    # --- Case 3: bf16 inputs (upcast to f32 inside the kernel) ---
    B3, D3 = 24, 64
    k_h3, k_r3, k_t3 = jax.random.split(key, 3)
    head3 = jax.random.normal(k_h3, (B3, D3)).astype(jnp.bfloat16)
    relation3 = jax.random.normal(k_r3, (B3, D3)).astype(jnp.bfloat16)
    tail3 = jax.random.normal(k_t3, (B3, D3)).astype(jnp.bfloat16)

    out3 = transe_forward(head3, relation3, tail3, p_norm=1, norm_flag=True,
                          margin=1)
    out3 = jax.block_until_ready(out3)
    ref3 = transe_reference(head3, relation3, tail3, p_norm=1, norm_flag=True,
                            margin=1)
    assert out3.shape == (B3,)
    assert jnp.allclose(out3, ref3, atol=1e-4, rtol=1e-4), (out3, ref3)

    print("KERNEL_OK")
</pallas_src>

<mosaic_0001>
module attributes {stable_mosaic.version = 11 : i64} {
  func.func @_transe_kernel(%arg0: i32, %arg1: memref<8x32xf32, #tpu.memory_space<vmem>>, %arg2: memref<8x32xf32, #tpu.memory_space<vmem>>, %arg3: memref<8x32xf32, #tpu.memory_space<vmem>>, %arg4: memref<8x1xf32, #tpu.memory_space<vmem>>) attributes {dimension_semantics = [#tpu.dimension_semantics<parallel>], iteration_bounds = array<i64: 1>, scalar_prefetch = 0 : i64, scratch_operands = 0 : i64, tpu.core_type = #tpu.core_type<tc>, window_params = [{transform_indices = @transform_0, window_bounds = array<i64: 8, 32>}, {transform_indices = @transform_1, window_bounds = array<i64: 8, 32>}, {transform_indices = @transform_2, window_bounds = array<i64: 8, 32>}, {transform_indices = @transform_3, window_bounds = array<i64: 8, 1>}]} {
    %c0 = arith.constant 0 : index
    %c0_0 = arith.constant 0 : index
    %0 = vector.load %arg1[%c0, %c0_0] : memref<8x32xf32, #tpu.memory_space<vmem>>, vector<8x32xf32>
    %c0_1 = arith.constant 0 : index
    %c0_2 = arith.constant 0 : index
    %1 = vector.load %arg2[%c0_1, %c0_2] : memref<8x32xf32, #tpu.memory_space<vmem>>, vector<8x32xf32>
    %c0_3 = arith.constant 0 : index
    %c0_4 = arith.constant 0 : index
    %2 = vector.load %arg3[%c0_3, %c0_4] : memref<8x32xf32, #tpu.memory_space<vmem>>, vector<8x32xf32>
    %3 = arith.mulf %0, %0 : vector<8x32xf32>
    %cst = arith.constant dense<0.000000e+00> : vector<8xf32>
    %4 = vector.multi_reduction <add>, %3, %cst [1] : vector<8x32xf32> to vector<8xf32>
    %5 = vector.shape_cast %4 : vector<8xf32> to vector<8x1xf32>
    %cst_5 = arith.constant 1.000000e-24 : f32
    %6 = vector.broadcast %cst_5 : f32 to vector<8x1xf32>
    %7 = arith.maximumf %5, %6 : vector<8x1xf32>
    %8 = math.rsqrt %7 : vector<8x1xf32>
    %9 = vector.broadcast %8 : vector<8x1xf32> to vector<8x32xf32>
    %10 = arith.mulf %0, %9 : vector<8x32xf32>
    %11 = arith.mulf %1, %1 : vector<8x32xf32>
    %cst_6 = arith.constant dense<0.000000e+00> : vector<8xf32>
    %12 = vector.multi_reduction <add>, %11, %cst_6 [1] : vector<8x32xf32> to vector<8xf32>
    %13 = vector.shape_cast %12 : vector<8xf32> to vector<8x1xf32>
    %cst_7 = arith.constant 1.000000e-24 : f32
    %14 = vector.broadcast %cst_7 : f32 to vector<8x1xf32>
    %15 = arith.maximumf %13, %14 : vector<8x1xf32>
    %16 = math.rsqrt %15 : vector<8x1xf32>
    %17 = vector.broadcast %16 : vector<8x1xf32> to vector<8x32xf32>
    %18 = arith.mulf %1, %17 : vector<8x32xf32>
    %19 = arith.mulf %2, %2 : vector<8x32xf32>
    %cst_8 = arith.constant dense<0.000000e+00> : vector<8xf32>
    %20 = vector.multi_reduction <add>, %19, %cst_8 [1] : vector<8x32xf32> to vector<8xf32>
    %21 = vector.shape_cast %20 : vector<8xf32> to vector<8x1xf32>
    %cst_9 = arith.constant 1.000000e-24 : f32
    %22 = vector.broadcast %cst_9 : f32 to vector<8x1xf32>
    %23 = arith.maximumf %21, %22 : vector<8x1xf32>
    %24 = math.rsqrt %23 : vector<8x1xf32>
    %25 = vector.broadcast %24 : vector<8x1xf32> to vector<8x32xf32>
    %26 = arith.mulf %2, %25 : vector<8x32xf32>
    %27 = arith.addf %10, %18 : vector<8x32xf32>
    %28 = arith.subf %27, %26 : vector<8x32xf32>
    %29 = math.absf %28 : vector<8x32xf32>
    %cst_10 = arith.constant dense<0.000000e+00> : vector<8xf32>
    %30 = vector.multi_reduction <add>, %29, %cst_10 [1] : vector<8x32xf32> to vector<8xf32>
    %31 = vector.shape_cast %30 : vector<8xf32> to vector<8x1xf32>
    %cst_11 = arith.constant 1.000000e+00 : f32
    %32 = vector.broadcast %cst_11 : f32 to vector<8x1xf32>
    %33 = arith.subf %32, %31 : vector<8x1xf32>
    %c0_12 = arith.constant 0 : index
    %c0_13 = arith.constant 0 : index
    %34 = vector.load %arg4[%c0_12, %c0_13] : memref<8x1xf32, #tpu.memory_space<vmem>>, vector<8x1xf32>
    tpu.vector_store %arg4[%c0_12, %c0_13], %33 {strides = array<i32>} : memref<8x1xf32, #tpu.memory_space<vmem>>, vector<8x1xf32>,
    return
  }
  func.func @transform_0(%arg0: i32) -> (i32, i32) {
    %c0_i32 = arith.constant 0 : i32
    %c0_i32_0 = arith.constant 0 : i32
    return %arg0, %c0_i32 : i32, i32
  }
  func.func @transform_1(%arg0: i32) -> (i32, i32) {
    %c0_i32 = arith.constant 0 : i32
    %c0_i32_0 = arith.constant 0 : i32
    return %arg0, %c0_i32 : i32, i32
  }
  func.func @transform_2(%arg0: i32) -> (i32, i32) {
    %c0_i32 = arith.constant 0 : i32
    %c0_i32_0 = arith.constant 0 : i32
    return %arg0, %c0_i32 : i32, i32
  }
  func.func @transform_3(%arg0: i32) -> (i32, i32) {
    %c0_i32 = arith.constant 0 : i32
    %c0_i32_0 = arith.constant 0 : i32
    return %arg0, %c0_i32 : i32, i32
  }
}

</mosaic_0001>

<llo_original>
// kernel: tpu_custom_call.1
$region0: #{tpu_custom_call.1}
  #allocation0 [shape = 'u32[]', space=smem, size = 0x4, offset = 0x4, fixed_abs, tag = 'smem constant byte address 0x4 - core index']
  #allocation1 [shape = 'u32[144,128]{1,0:T(1,128)}', space=vmem, size = 0x12000, scoped, tag = 'internal scratch']
  %s0 = inlined_call_operand.hbm [shape: f32[8,32], index: 0, kind: input, shape index: {}]
  %s1 = inlined_call_operand.hbm [shape: f32[8,32], index: 1, kind: input, shape index: {}]
  %s2 = inlined_call_operand.hbm [shape: f32[8,32], index: 2, kind: input, shape index: {}]
  %s3 = inlined_call_operand.vmem [shape: f32[8,1], index: 3, kind: output, shape index: {}]
  %s4 = sld [smem:[#allocation0]]
  $region34: #{tpu_custom_call.1} parent=0
    _
  %s6 = ssub.s32 1, %s4
  %s7 = scalar_select 0, %s6, %s4
  $region1: #{tpu_custom_call.1} parent=0
    #allocation2 [shape = 'u8[4096]{0}', space=vmem, size = 0x1000, scoped, tag = 'input window, operand 0, single buffered']
    #allocation3 [shape = 's32[1]{0}', space=sflag, size = 0x4, scoped, tag = 'scoped memory for tpu_custom_call.1']
    #allocation4 [shape = 'u8[4096]{0}', space=vmem, size = 0x1000, scoped, tag = 'input window, operand 1, single buffered']
    #allocation5 [shape = 's32[1]{0}', space=sflag, size = 0x4, scoped, tag = 'scoped memory for tpu_custom_call.1']
    #allocation6 [shape = 'u8[4096]{0}', space=vmem, size = 0x1000, scoped, tag = 'input window, operand 2, single buffered']
    %8 = vsyncpa [#allocation3], 0
    %9 = vsyncpa [#allocation5], 0
    // Predicated region
    $region2: #{tpu_custom_call.1} parent=1 // pred_check
      _
    $region3: #{tpu_custom_call.1} parent=1 // pred_check_branch
      %11 = sbr.rel (0) target = $region5
    $region4: #{tpu_custom_call.1} parent=1 // pred_region
      %s13 = ssub.s32 128, 128
      %14 = vsyncadd [#allocation3], %s13
      %s16 = sshll.u32 [#allocation2], 4
      %s17 = int_to_ptr.vmem [resolvable:$true] %s16
      %19 = dma.hbm_to_vmem [thread:$0]  %s0, 128, %s17, [#allocation3]
    $region5: #{tpu_custom_call.1} parent=1 // pred_fallthru
      _
    // Predicated region
    $region6: #{tpu_custom_call.1} parent=1 // pred_check
      _
    $region7: #{tpu_custom_call.1} parent=1 // pred_check_branch
      %21 = sbr.rel (0) target = $region9
    $region8: #{tpu_custom_call.1} parent=1 // pred_region
      %s23 = ssub.s32 128, 128
      %24 = vsyncadd [#allocation5], %s23
      %s26 = sshll.u32 [#allocation4], 4
      %s27 = int_to_ptr.vmem [resolvable:$true] %s26
      %29 = dma.hbm_to_vmem [thread:$0]  %s1, 128, %s27, [#allocation5]
    $region9: #{tpu_custom_call.1} parent=1 // pred_fallthru
      _
    // Predicated region
    $region10: #{tpu_custom_call.1} parent=1 // pred_check
      _
    $region11: #{tpu_custom_call.1} parent=1 // pred_check_branch
      %31 = sbr.rel (0) target = $region13
    $region12: #{tpu_custom_call.1} parent=1 // pred_region
      %s33 = ssub.s32 128, 128
      %34 = vsyncadd [#allocation5], %s33
      %s36 = sshll.u32 [#allocation6], 4
      %s37 = int_to_ptr.vmem [resolvable:$true] %s36
      %39 = dma.hbm_to_vmem [thread:$0]  %s2, 128, %s37, [#allocation5]
    $region13: #{tpu_custom_call.1} parent=1 // pred_fallthru
      _
    // Predicated region
    $region14: #{tpu_custom_call.1} parent=1 // pred_check
      _
    $region15: #{tpu_custom_call.1} parent=1 // pred_check_branch
      %41 = sbr.rel (0) target = $region17
    $region16: #{tpu_custom_call.1} parent=1 // pred_region
      %42 = dma.done [#allocation3], 128
    $region17: #{tpu_custom_call.1} parent=1 // pred_fallthru
      _
    // Predicated region
    $region18: #{tpu_custom_call.1} parent=1 // pred_check
      _
    $region19: #{tpu_custom_call.1} parent=1 // pred_check_branch
      %44 = sbr.rel (0) target = $region21
    $region20: #{tpu_custom_call.1} parent=1 // pred_region
      %45 = dma.done [#allocation5], 128
    $region21: #{tpu_custom_call.1} parent=1 // pred_fallthru
      _
    // Predicated region
    $region22: #{tpu_custom_call.1} parent=1 // pred_check
      _
    $region23: #{tpu_custom_call.1} parent=1 // pred_check_branch
      %47 = sbr.rel (0) target = $region25
    $region24: #{tpu_custom_call.1} parent=1 // pred_region
      %48 = dma.done [#allocation5], 128
    $region25: #{tpu_custom_call.1} parent=1 // pred_fallthru
      _
    %v49 = vld [vmem:[#allocation2] sm:$0xff]
    %v50 = vld [vmem:[#allocation4] sm:$0xff]
    %v51 = vld [vmem:[#allocation6] sm:$0xff]
    %v52 = vmul.f32 %v49, %v49
    %vm53 = vcmask 261120
    %v54 = vsel %vm53, %v52, 0.0
    %55 = vadd.xlane.f32.xlu0 %v54
    %v56 = vpop.xlane.xlu0 %55
    %v57 = vmax.f32 %v56, 1e-24
    %v58 = vrsqrt.pop %v57
    %v59 = vmul.f32 %v49, %v58
    %v60 = vmul.f32 %v50, %v50
    %v61 = vsel %vm53, %v60, 0.0
    %62 = vadd.xlane.f32.xlu0 %v61
    %v63 = vpop.xlane.xlu0 %62
    %v64 = vmax.f32 %v63, 1e-24
    %v65 = vrsqrt.pop %v64
    %v66 = vmul.f32 %v50, %v65
    %v67 = vmul.f32 %v51, %v51
    %v68 = vsel %vm53, %v67, 0.0
    %69 = vadd.xlane.f32.xlu0 %v68
    %v70 = vpop.xlane.xlu0 %69
    %v71 = vmax.f32 %v70, 1e-24
    %v72 = vrsqrt.pop %v71
    %v73 = vmul.f32 %v51, %v72
    %v74 = vadd.f32 %v59, %v66
    %v75 = vsub.f32 %v74, %v73
    %v76 = vand.u32 2147483647, %v75
    %v77 = vsel %vm53, %v76, 0.0
    %78 = vadd.xlane.f32.xlu0 %v77
    %v79 = vpop.xlane.xlu0 %78
    %v80 = vsub.f32 1.0, %v79
    %vm81 = vcmask 7168
    %82 = vst.msk [vmem:[%s3] sm:$0xff] %vm81, %v80
    // Predicated region
    $region26: #{tpu_custom_call.1} parent=1 // pred_check
      _
    $region27: #{tpu_custom_call.1} parent=1 // pred_check_branch
      %84 = sbr.rel (0) target = $region29
    $region28: #{tpu_custom_call.1} parent=1 // pred_region
      _
    $region29: #{tpu_custom_call.1} parent=1 // pred_fallthru
      _
    // Predicated region
    $region30: #{tpu_custom_call.1} parent=1 // pred_check
      _
    $region31: #{tpu_custom_call.1} parent=1 // pred_check_branch
      %86 = sbr.rel (0) target = $region33
    $region32: #{tpu_custom_call.1} parent=1 // pred_region
      _
    $region33: #{tpu_custom_call.1} parent=1 // pred_fallthru
      _
    %87 = vsyncpa [#allocation3], 1
    %88 = vsyncpa [#allocation5], 1

</llo_original>
